<compile_context>
chip_gen: v7x
topology: tpu7x:2x2x1
jax: 0.10.0
libtpu: 0.0.40
codegen_flags: <defaults>
</compile_context>

<pallas_src>
import jax
import jax.numpy as jnp
from jax.experimental import pallas as pl
from jax.experimental.pallas import tpu as pltpu

LANES = 128
SUBLANES = 8


def _partial_sq_kernel(o_ref, t_ref, out_ref):
    # o_ref / t_ref: (tb, 128) f32 tiles of the flattened, cropped,
    # real/imag-interleaved operands.  Emit an (8, 128) partial sum of
    # squared differences for this block (vector accumulation only; no
    # per-step XLU cross-lane reduce, no scalar RMW chain).
    d = o_ref[...] - t_ref[...]
    sq = d * d
    tb = sq.shape[0]
    # Splitting the sublane dim keeps every (8,128) tile intact -> no VMEM
    # relayout; the axis-0 sum is plain VPU adds.
    out_ref[...] = jnp.sum(sq.reshape(tb // SUBLANES, SUBLANES, LANES), axis=0)


def make_cropped_loss(loss_slice, shape, *, block_rows=2048):
    """Build a callable equivalent to cropped_loss(loss_slice).forward.

    Only unit-stride `loss_slice` is supported (matches the module's usage).
    """
    B, H, W = shape
    h0, h1, hs = loss_slice.indices(H)
    w0, w1, ws = loss_slice.indices(W)
    assert hs == 1 and ws == 1, "only unit-stride loss_slice supported"
    hc, wc = h1 - h0, w1 - w0
    count = B * hc * wc                      # complex elements in the crop

    total_f32 = count * 2                    # real + imag, flattened together
    rows = pl.cdiv(total_f32, LANES)         # rows of the lane-dense slab

    # Tile rows: multiple of 8 (sublane granularity), capped by block_rows.
    # block_rows=2048 -> 2048*128*4 B = 1 MiB per operand per block;
    # double-buffered x 2 operands = 4 MiB VMEM, safe on all generations.
    block_rows = max(SUBLANES, (block_rows // SUBLANES) * SUBLANES)
    tb = min(block_rows, ((rows + SUBLANES - 1) // SUBLANES) * SUBLANES)
    tb = max(tb, SUBLANES)
    num_blocks = pl.cdiv(rows, tb)
    rows_padded = num_blocks * tb
    padded_total = rows_padded * LANES

    in_spec = pl.BlockSpec((tb, LANES), lambda i: (i, 0))

    call = pl.pallas_call(
        _partial_sq_kernel,
        out_shape=jax.ShapeDtypeStruct((num_blocks * SUBLANES, LANES),
                                       jnp.float32),
        grid_spec=pltpu.PrefetchScalarGridSpec(
            num_scalar_prefetch=0,
            grid=(num_blocks,),
            in_specs=[in_spec, in_spec],
            out_specs=pl.BlockSpec((SUBLANES, LANES), lambda i: (i, 0)),
        ),
        compiler_params=pltpu.CompilerParams(
            # Per-block independent partial sums -> parallel grid axis
            # (megacore-friendly on v7x).  VMEM use (~4 MiB double-buffered)
            # is well under the default scoped limit on every generation.
            dimension_semantics=("parallel",),
        ),
    )

    def _flatten(x):
        # Crop first (cuts HBM reads by (H*W)/(hc*wc)), then split complex
        # into f32, flatten and zero-pad to the lane-dense slab.  This all
        # fuses into a single XLA pass per operand feeding the kernel.
        xc = x[:, h0:h1, w0:w1].astype(jnp.complex64)
        xf = jnp.stack([jnp.real(xc), jnp.imag(xc)], axis=-1).reshape(-1)
        if padded_total != total_f32:
            xf = jnp.pad(xf, (0, padded_total - total_f32))
        return xf.reshape(rows_padded, LANES)

    def cropped_loss(output, target):
        partials = call(_flatten(output), _flatten(target))
        # Tiny finalize: one cross-lane reduce over (num_blocks*8, 128) and a
        # divide by the true (unpadded) complex element count.
        return jnp.sum(partials) / jnp.float32(count)

    return jax.jit(cropped_loss)


if __name__ == "__main__":
    key = jax.random.PRNGKey(0)

    # --- Test 1: small shape consistent with the module, single-block grid.
    B, H, W = 2, 16, 16
    loss_slice = slice(4, 12)  # central 8x8 crop

    k1, k2, k3, k4 = jax.random.split(key, 4)
    output = (jax.random.normal(k1, (B, H, W), jnp.float32)
              + 1j * jax.random.normal(k2, (B, H, W), jnp.float32)
              ).astype(jnp.complex64)
    target = (jax.random.normal(k3, (B, H, W), jnp.float32)
              + 1j * jax.random.normal(k4, (B, H, W), jnp.float32)
              ).astype(jnp.complex64)

    loss_fn = make_cropped_loss(loss_slice, (B, H, W))
    loss = jax.block_until_ready(loss_fn(output, target))

    diff = (output - target)[:, loss_slice, loss_slice]
    ref = jnp.mean(jnp.abs(diff) ** 2)
    assert jnp.allclose(loss, ref, rtol=1e-5, atol=1e-6), (loss, ref)

    # --- Test 2: exercise the multi-block "parallel" grid path with a small
    # forced tile (block_rows=8 -> 9 grid steps).
    B2, H2, W2 = 2, 64, 64
    sl2 = slice(8, 56)
    k5, k6, k7, k8 = jax.random.split(jax.random.PRNGKey(1), 4)
    out2 = (jax.random.normal(k5, (B2, H2, W2), jnp.float32)
            + 1j * jax.random.normal(k6, (B2, H2, W2), jnp.float32)
            ).astype(jnp.complex64)
    tgt2 = (jax.random.normal(k7, (B2, H2, W2), jnp.float32)
            + 1j * jax.random.normal(k8, (B2, H2, W2), jnp.float32)
            ).astype(jnp.complex64)
    loss_fn2 = make_cropped_loss(sl2, (B2, H2, W2), block_rows=8)
    loss2 = jax.block_until_ready(loss_fn2(out2, tgt2))
    diff2 = (out2 - tgt2)[:, sl2, sl2]
    ref2 = jnp.mean(jnp.abs(diff2) ** 2)
    assert jnp.allclose(loss2, ref2, rtol=1e-5, atol=1e-6), (loss2, ref2)

    print("KERNEL_OK")
</pallas_src>

<mosaic_0001>
module attributes {stable_mosaic.version = 11 : i64} {
  func.func @_partial_sq_kernel(%arg0: i32, %arg1: memref<8x128xf32, #tpu.memory_space<vmem>>, %arg2: memref<8x128xf32, #tpu.memory_space<vmem>>, %arg3: memref<8x128xf32, #tpu.memory_space<vmem>>) attributes {dimension_semantics = [#tpu.dimension_semantics<parallel>], iteration_bounds = array<i64: 1>, scalar_prefetch = 0 : i64, scratch_operands = 0 : i64, tpu.core_type = #tpu.core_type<tc>, window_params = [{transform_indices = @transform_0, window_bounds = array<i64: 8, 128>}, {transform_indices = @transform_1, window_bounds = array<i64: 8, 128>}, {transform_indices = @transform_2, window_bounds = array<i64: 8, 128>}]} {
    %c0 = arith.constant 0 : index
    %c0_0 = arith.constant 0 : index
    %0 = vector.load %arg1[%c0, %c0_0] : memref<8x128xf32, #tpu.memory_space<vmem>>, vector<8x128xf32>
    %c0_1 = arith.constant 0 : index
    %c0_2 = arith.constant 0 : index
    %1 = vector.load %arg2[%c0_1, %c0_2] : memref<8x128xf32, #tpu.memory_space<vmem>>, vector<8x128xf32>
    %2 = arith.subf %0, %1 : vector<8x128xf32>
    %3 = arith.mulf %2, %2 : vector<8x128xf32>
    %4 = vector.shape_cast %3 : vector<8x128xf32> to vector<1x8x128xf32>
    %cst = arith.constant dense<0.000000e+00> : vector<8x128xf32>
    %5 = vector.multi_reduction <add>, %4, %cst [0] : vector<1x8x128xf32> to vector<8x128xf32>
    %c0_3 = arith.constant 0 : index
    %c0_4 = arith.constant 0 : index
    %6 = vector.load %arg3[%c0_3, %c0_4] : memref<8x128xf32, #tpu.memory_space<vmem>>, vector<8x128xf32>
    tpu.vector_store %arg3[%c0_3, %c0_4], %5 {strides = array<i32>} : memref<8x128xf32, #tpu.memory_space<vmem>>, vector<8x128xf32>,
    return
  }
  func.func @transform_0(%arg0: i32) -> (i32, i32) {
    %c0_i32 = arith.constant 0 : i32
    %c0_i32_0 = arith.constant 0 : i32
    return %arg0, %c0_i32 : i32, i32
  }
  func.func @transform_1(%arg0: i32) -> (i32, i32) {
    %c0_i32 = arith.constant 0 : i32
    %c0_i32_0 = arith.constant 0 : i32
    return %arg0, %c0_i32 : i32, i32
  }
  func.func @transform_2(%arg0: i32) -> (i32, i32) {
    %c0_i32 = arith.constant 0 : i32
    %c0_i32_0 = arith.constant 0 : i32
    return %arg0, %c0_i32 : i32, i32
  }
}

</mosaic_0001>

<llo_original>
// kernel: custom-call.2
$region0: #{custom-call.2}
  %s0 = inlined_call_operand.hbm [shape: c64[2,16,16], index: 0, kind: input, shape index: {}]
  %s1 = inlined_call_operand.vmem [shape: f32[2,16,16], index: 1, kind: output, shape index: {}]
  $region1: #{custom-call.2} parent=0
    #allocation0 [shape = 's32[1]{0}', space=sflag, size = 0x4, scoped, tag = 'scoped memory for custom-call.2']
    %2 = vsyncpa [#allocation0], 0
    %s3 = sshll.u32 %s1, 4
    %s4 = int_to_ptr.vmem [resolvable:$true] %s3
    %6 = dma.hbm_to_vmem [thread:$0]  %s0, 512, %s4, [#allocation0]
    %7 = dma.done [#allocation0], 512
    %8 = vsyncpa [#allocation0], 1

// kernel: custom-call.3
$region0: #{custom-call.3}
  %s0 = inlined_call_operand.hbm [shape: c64[2,16,16], index: 0, kind: input, shape index: {}]
  %s1 = inlined_call_operand.vmem [shape: f32[2,16,16], index: 1, kind: output, shape index: {}]
  %s2 = scalar_lea.hbm %s0, 512
  $region1: #{custom-call.3} parent=0
    #allocation0 [shape = 's32[1]{0}', space=sflag, size = 0x4, scoped, tag = 'scoped memory for custom-call.3']
    %3 = vsyncpa [#allocation0], 0
    %s4 = sshll.u32 %s1, 4
    %s5 = int_to_ptr.vmem [resolvable:$true] %s4
    %7 = dma.hbm_to_vmem [thread:$0]  %s2, 512, %s5, [#allocation0]
    %8 = dma.done [#allocation0], 512
    %9 = vsyncpa [#allocation0], 1

// kernel: cropped_loss.1
$region0: #{cropped_loss.1}
  #allocation0 [shape = 'u32[]', space=smem, size = 0x4, offset = 0x4, fixed_abs, tag = 'smem constant byte address 0x4 - core index']
  #allocation1 [shape = 'u32[144,128]{1,0:T(1,128)}', space=vmem, size = 0x12000, scoped, tag = 'internal scratch']
  %s0 = inlined_call_operand.vmem [shape: f32[8,128], index: 0, kind: input, shape index: {}]
  %s1 = inlined_call_operand.vmem [shape: f32[8,128], index: 1, kind: input, shape index: {}]
  %s2 = inlined_call_operand.vmem [shape: f32[8,128], index: 2, kind: output, shape index: {}]
  %s3 = sld [smem:[#allocation0]]
  $region18: #{cropped_loss.1} parent=0
    _
  %s5 = ssub.s32 1, %s3
  %s6 = scalar_select 0, %s5, %s3
  // Predicated region
  $region2: #{cropped_loss.1} parent=0 // pred_check
    _
  $region3: #{cropped_loss.1} parent=0 // pred_check_branch
    %8 = sbr.rel (0) target = $region5
  $region4: #{cropped_loss.1} parent=0 // pred_region
    _
  $region5: #{cropped_loss.1} parent=0 // pred_fallthru
    _
  // Predicated region
  $region6: #{cropped_loss.1} parent=0 // pred_check
    _
  $region7: #{cropped_loss.1} parent=0 // pred_check_branch
    %10 = sbr.rel (0) target = $region9
  $region8: #{cropped_loss.1} parent=0 // pred_region
    _
  $region9: #{cropped_loss.1} parent=0 // pred_fallthru
    _
  %v11 = vld [vmem:[%s0] sm:$0xff]
  %v12 = vld [vmem:[%s1] sm:$0xff]
  %v13 = vsub.f32 %v11, %v12
  %v14 = vmul.f32 %v13, %v13
  %v15 = vadd.f32 %v14, 0.0
  %16 = vst [vmem:[%s2] sm:$0xff] %v15
  // Predicated region
  $region10: #{cropped_loss.1} parent=0 // pred_check
    _
  $region11: #{cropped_loss.1} parent=0 // pred_check_branch
    %18 = sbr.rel (0) target = $region13
  $region12: #{cropped_loss.1} parent=0 // pred_region
    _
  $region13: #{cropped_loss.1} parent=0 // pred_fallthru
    _
  // Predicated region
  $region14: #{cropped_loss.1} parent=0 // pred_check
    _
  $region15: #{cropped_loss.1} parent=0 // pred_check_branch
    %20 = sbr.rel (0) target = $region17
  $region16: #{cropped_loss.1} parent=0 // pred_region
    _
  $region17: #{cropped_loss.1} parent=0 // pred_fallthru
    _

</llo_original>
